<compile_context>
chip_gen: v5e
topology: v5e:2x2
jax: 0.10.0
libtpu: 0.0.40
codegen_flags: <defaults>
</compile_context>

<pallas_src>
import math
import functools

import jax
import jax.numpy as jnp
from jax.experimental import pallas as pl
from jax.experimental.pallas import tpu as pltpu


def _self_attention_kernel(x_ref, w_ref, b_ref, o_ref, *,
                           bt, L, L_pad, out_dim, seg, relative, compute_dtype):
    m_rows = bt * L_pad
    in_dim = x_ref.shape[-1]

    x = x_ref[...].reshape(m_rows, in_dim).astype(compute_dtype)
    w = w_ref[...].astype(compute_dtype)

    # Fused K|Q|V projection: one MXU feed, f32 accumulation, one f32 bias add.
    kqv = jnp.dot(x, w, preferred_element_type=jnp.float32) + b_ref[...]    # [m, 3*seg]

    # Lane-aligned segment slices (each segment padded to `seg`, a multiple of
    # 128).  Padded K/Q columns are exactly zero -> no effect on K.Q^T.
    k3 = kqv[:, 0 * seg:1 * seg].reshape(bt, L_pad, seg).astype(compute_dtype)
    q3 = kqv[:, 1 * seg:2 * seg].reshape(bt, L_pad, seg).astype(compute_dtype)
    v3 = kqv[:, 2 * seg:2 * seg + out_dim].reshape(bt, L_pad, out_dim)

    # raw[b, j, l] = sum_d K[b, j, d] * Q_scaled[b, l, d]  (scale pre-folded).
    raw = jax.lax.dot_general(
        k3, q3, dimension_numbers=(((2,), (2,)), ((0,), (0,))),
        preferred_element_type=jnp.float32)                                  # [bt, Lp, Lp]

    if L_pad != L:
        # Padded query columns must get no softmax mass.
        col = jax.lax.broadcasted_iota(jnp.int32, (1, L_pad, L_pad), 2)
        raw = jnp.where(col < L, raw, -1e30)

    # Numerically-stable softmax over the query axis; normalisation deferred.
    mx = jnp.max(raw, axis=-1, keepdims=True)
    e = jnp.exp(raw - mx)
    s = jnp.sum(e, axis=-1, keepdims=True)                                   # [bt, Lp, 1]

    if relative:
        # triu(w, 0) - tril(w, -1) == where(col >= row, w, -w); the sign flip
        # commutes with the positive normalisation, so apply it to e.
        row = jax.lax.broadcasted_iota(jnp.int32, (1, L_pad, L_pad), 1)
        col = jax.lax.broadcasted_iota(jnp.int32, (1, L_pad, L_pad), 2)
        e = jnp.where(col >= row, e, -e)

    # out[b, j, d] = sum_l e[b, j, l] * V[b, l, d], then normalise (EUP recip
    # multiply over only [bt, Lp, out_dim] instead of [bt, Lp, Lp]).
    out = jax.lax.dot_general(
        e.astype(compute_dtype), v3.astype(compute_dtype),
        dimension_numbers=(((2,), (1,)), ((0,), (0,))),
        preferred_element_type=jnp.float32)                                  # [bt, Lp, out_dim]
    out = out * pl.reciprocal(s, approx=True)

    o_ref[...] = out.astype(o_ref.dtype)


def _round_up(x, m):
    return pl.cdiv(x, m) * m


def _est_vmem_bytes(bt, L_pad, in_dim, out_dim, seg):
    """Rough f32-bytes estimate of live VMEM per grid step."""
    m = bt * L_pad
    live = m * 3 * seg + 2 * bt * L_pad * L_pad + m * out_dim      # kqv + (raw, e) + out
    io = 2 * m * in_dim + 2 * m * out_dim                          # double-buffered x / out tiles
    wts = 2 * (in_dim * 3 * seg + 3 * seg)                         # fused weight + bias buffers
    return 4 * (live + io + wts)


def self_attention_forward(inputs, wk, wq, wv, bk, bq, bv,
                           attention_type="regular",
                           compute_dtype=jnp.float32,
                           target_rows=512):
    """Pallas TPU forward of SelfAttention.

    inputs: [B, L, in_dim] or [L, in_dim] float32
    wk/wq/wv: [out_dim, in_dim], bk/bq/bv: [out_dim]
    compute_dtype: dtype fed to the MXU matmuls.  f32 (default) matches the
      module's numerics; jnp.bfloat16 is the recommended throughput option on
      v6e/v7x (accumulation and softmax stay f32).
    target_rows: MXU M-row target per grid step (use ~256 on v5e).
    """
    batched = inputs.ndim == 3
    if not batched:
        inputs = inputs[None, :, :]
    B, L, in_dim = inputs.shape
    out_dim = wk.shape[0]
    seg = _round_up(out_dim, 128)        # lane-aligned segment width inside the fused QKV weight
    L_pad = _round_up(L, 8)              # sublane-aligned sequence length (f32)

    # --- batch-tile selection --------------------------------------------------
    bt = max(1, min(B, pl.cdiv(target_rows, L_pad)))
    vmem_budget = 20 * 1024 * 1024
    while bt > 1 and _est_vmem_bytes(bt, L_pad, in_dim, out_dim, seg) > vmem_budget:
        bt -= 1
    if B > 1 and bt >= B:
        bt = pl.cdiv(B, 2)               # keep >= 2 grid steps (v7x has 2 TensorCores)
    B_pad = pl.cdiv(B, bt) * bt          # no exact-divisor requirement: pad B
    n_steps = B_pad // bt

    # --- wrapper-side glue (XLA): fused/padded weights, folded 1/sqrt scale ----
    scale = 1.0 / math.sqrt(out_dim)
    pad_w = lambda w2: jnp.pad(w2, ((0, 0), (0, seg - out_dim)))
    pad_b = lambda b1: jnp.pad(b1, (0, seg - out_dim))
    w_qkv = jnp.concatenate(
        [pad_w(wk.T), pad_w(wq.T * scale), pad_w(wv.T)], axis=1).astype(jnp.float32)
    b_qkv = jnp.concatenate(
        [pad_b(bk), pad_b(bq * scale), pad_b(bv)])[None, :].astype(jnp.float32)

    x = inputs.astype(jnp.float32)
    if B_pad != B or L_pad != L:
        x = jnp.pad(x, ((0, B_pad - B), (0, L_pad - L), (0, 0)))

    kernel = functools.partial(
        _self_attention_kernel,
        bt=bt, L=L, L_pad=L_pad, out_dim=out_dim, seg=seg,
        relative=(attention_type == "relative"),
        compute_dtype=compute_dtype)

    out = pl.pallas_call(
        kernel,
        out_shape=jax.ShapeDtypeStruct((B_pad, L_pad, out_dim), jnp.float32),
        grid=(n_steps,),
        in_specs=[
            pl.BlockSpec((bt, L_pad, in_dim), lambda i: (i, 0, 0)),
            pl.BlockSpec((in_dim, 3 * seg), lambda i: (0, 0)),
            pl.BlockSpec((1, 3 * seg), lambda i: (0, 0)),
        ],
        out_specs=pl.BlockSpec((bt, L_pad, out_dim), lambda i: (i, 0, 0)),
        compiler_params=pltpu.CompilerParams(
            dimension_semantics=("parallel",),
            vmem_limit_bytes=32 * 1024 * 1024,
        ),
    )(x, w_qkv, b_qkv)

    out = out[:B, :L, :]
    if not batched:
        out = out[0]
    return out


def _reference_forward(inputs, wk, wq, wv, bk, bq, bv, attention_type="regular"):
    """Pure-JAX reference mirroring the PyTorch module, for verification."""
    batched = inputs.ndim == 3
    if not batched:
        inputs = inputs[None]
    out_dim = wk.shape[0]
    keys = jnp.einsum("ij,klj->kli", wk, inputs) + bk
    queries = jnp.einsum("ij,klj->kli", wq, inputs) + bq
    values = jnp.einsum("ij,klj->kli", wv, inputs) + bv
    raw = jnp.einsum("ijk,ilk->ijl", keys, queries) / math.sqrt(out_dim)
    w = jax.nn.softmax(raw, axis=2)
    if attention_type == "relative":
        w = jnp.triu(w, k=0) - jnp.tril(w, k=-1)
    out = jnp.einsum("ijk,ikl->ijl", w, values)
    if not batched:
        out = out[0]
    return out


if __name__ == "__main__":
    # Small shapes consistent with the module: batch=2, seq_len=8, in_dim=16, out_dim=32
    B, L, in_dim, out_dim = 2, 8, 16, 32

    key = jax.random.PRNGKey(0)
    k_x, k_wk, k_wq, k_wv, k_bk, k_bq, k_bv, k_x2 = jax.random.split(key, 8)

    kscale = 1.0 / math.sqrt(in_dim)
    wk = jax.random.uniform(k_wk, (out_dim, in_dim), jnp.float32, -kscale, kscale)
    wq = jax.random.uniform(k_wq, (out_dim, in_dim), jnp.float32, -kscale, kscale)
    wv = jax.random.uniform(k_wv, (out_dim, in_dim), jnp.float32, -kscale, kscale)
    bk = jax.random.uniform(k_bk, (out_dim,), jnp.float32, -kscale, kscale)
    bq = jax.random.uniform(k_bq, (out_dim,), jnp.float32, -kscale, kscale)
    bv = jax.random.uniform(k_bv, (out_dim,), jnp.float32, -kscale, kscale)

    x = jax.random.normal(k_x, (B, L, in_dim), jnp.float32)

    # f32 path — matches module semantics (tolerance covers approx reciprocal).
    out = jax.block_until_ready(
        self_attention_forward(x, wk, wq, wv, bk, bq, bv, attention_type="regular"))
    ref = _reference_forward(x, wk, wq, wv, bk, bq, bv, attention_type="regular")
    assert out.shape == (B, L, out_dim)
    assert jnp.allclose(out, ref, atol=2e-3, rtol=2e-3), "regular mismatch"

    # 'relative' attention branch (triu - tril masking, sign applied pre-norm).
    out_rel = jax.block_until_ready(
        self_attention_forward(x, wk, wq, wv, bk, bq, bv, attention_type="relative"))
    ref_rel = _reference_forward(x, wk, wq, wv, bk, bq, bv, attention_type="relative")
    assert jnp.allclose(out_rel, ref_rel, atol=2e-3, rtol=2e-3), "relative mismatch"

    # bf16-MXU / f32-accumulate path (v6e/v7x throughput option) — loose check.
    out_bf16 = jax.block_until_ready(
        self_attention_forward(x, wk, wq, wv, bk, bq, bv, attention_type="regular",
                               compute_dtype=jnp.bfloat16))
    assert jnp.allclose(out_bf16, ref, atol=5e-2, rtol=5e-2), "bf16 mismatch"

    # Ragged shapes: B=3 (padded to the batch tile), L=5 (padded to sublane 8,
    # masked query columns) — exercises the padding/masking paths.
    x2 = jax.random.normal(k_x2, (3, 5, in_dim), jnp.float32)
    out_p = jax.block_until_ready(
        self_attention_forward(x2, wk, wq, wv, bk, bq, bv, attention_type="regular"))
    ref_p = _reference_forward(x2, wk, wq, wv, bk, bq, bv, attention_type="regular")
    assert out_p.shape == (3, 5, out_dim)
    assert jnp.allclose(out_p, ref_p, atol=2e-3, rtol=2e-3), "padded regular mismatch"

    out_pr = jax.block_until_ready(
        self_attention_forward(x2, wk, wq, wv, bk, bq, bv, attention_type="relative"))
    ref_pr = _reference_forward(x2, wk, wq, wv, bk, bq, bv, attention_type="relative")
    assert jnp.allclose(out_pr, ref_pr, atol=2e-3, rtol=2e-3), "padded relative mismatch"

    # Unbatched 2-D input path.
    out_u = jax.block_until_ready(
        self_attention_forward(x[0], wk, wq, wv, bk, bq, bv, attention_type="regular"))
    ref_u = _reference_forward(x[0], wk, wq, wv, bk, bq, bv, attention_type="regular")
    assert out_u.shape == (L, out_dim)
    assert jnp.allclose(out_u, ref_u, atol=2e-3, rtol=2e-3), "unbatched mismatch"

    print("KERNEL_OK")
</pallas_src>

<mosaic_0001>
module attributes {stable_mosaic.version = 11 : i64} {
  func.func @_self_attention_kernel(%arg0: i32, %arg1: memref<1x8x16xf32, #tpu.memory_space<vmem>>, %arg2: memref<16x384xf32, #tpu.memory_space<vmem>>, %arg3: memref<1x384xf32, #tpu.memory_space<vmem>>, %arg4: memref<1x8x32xf32, #tpu.memory_space<vmem>>) attributes {dimension_semantics = [#tpu.dimension_semantics<parallel>], iteration_bounds = array<i64: 2>, scalar_prefetch = 0 : i64, scratch_operands = 0 : i64, tpu.core_type = #tpu.core_type<tc>, window_params = [{transform_indices = @transform_0, window_bounds = array<i64: 1, 8, 16>}, {pipeline_mode = #tpu.pipeline_mode<synchronous>, transform_indices = @transform_1, window_bounds = array<i64: 16, 384>}, {pipeline_mode = #tpu.pipeline_mode<synchronous>, transform_indices = @transform_2, window_bounds = array<i64: 1, 384>}, {transform_indices = @transform_3, window_bounds = array<i64: 1, 8, 32>}]} {
    %c0 = arith.constant 0 : index
    %c0_0 = arith.constant 0 : index
    %c0_1 = arith.constant 0 : index
    %0 = vector.load %arg1[%c0, %c0_0, %c0_1] : memref<1x8x16xf32, #tpu.memory_space<vmem>>, vector<1x8x16xf32>
    %1 = vector.shape_cast %0 : vector<1x8x16xf32> to vector<8x16xf32>
    %c0_2 = arith.constant 0 : index
    %c0_3 = arith.constant 0 : index
    %2 = vector.load %arg2[%c0_2, %c0_3] : memref<16x384xf32, #tpu.memory_space<vmem>>, vector<16x384xf32>
    %cst = arith.constant dense<0.000000e+00> : vector<8x384xf32>
    %3 = tpu.matmul %1, %2, %cst {dimension_numbers = #tpu.dot_dimension_numbers<[1], [0], [0], [1], [0, 0, 1, 1], [], []>} : vector<8x16xf32>, vector<16x384xf32>, vector<8x384xf32> -> vector<8x384xf32>
    %c0_4 = arith.constant 0 : index
    %c0_5 = arith.constant 0 : index
    %4 = vector.load %arg3[%c0_4, %c0_5] : memref<1x384xf32, #tpu.memory_space<vmem>>, vector<1x384xf32>
    %5 = vector.broadcast %4 : vector<1x384xf32> to vector<8x384xf32>
    %6 = arith.addf %3, %5 : vector<8x384xf32>
    %7 = vector.extract_strided_slice %6 {offsets = [0, 0], sizes = [8, 128], strides = [1, 1]} : vector<8x384xf32> to vector<8x128xf32>
    %8 = vector.shape_cast %7 : vector<8x128xf32> to vector<1x8x128xf32>
    %9 = vector.extract_strided_slice %6 {offsets = [0, 128], sizes = [8, 128], strides = [1, 1]} : vector<8x384xf32> to vector<8x128xf32>
    %10 = vector.shape_cast %9 : vector<8x128xf32> to vector<1x8x128xf32>
    %11 = vector.extract_strided_slice %6 {offsets = [0, 256], sizes = [8, 32], strides = [1, 1]} : vector<8x384xf32> to vector<8x32xf32>
    %12 = vector.shape_cast %11 : vector<8x32xf32> to vector<1x8x32xf32>
    %cst_6 = arith.constant dense<0.000000e+00> : vector<1x8x8xf32>
    %13 = tpu.matmul %8, %10, %cst_6 {dimension_numbers = #tpu.dot_dimension_numbers<[2], [2], [1], [1], [0, 0, 0, 1, 1, 1], [0], [0]>} : vector<1x8x128xf32>, vector<1x8x128xf32>, vector<1x8x8xf32> -> vector<1x8x8xf32>
    %cst_7 = arith.constant dense<0xFF800000> : vector<1x8xf32>
    %14 = vector.multi_reduction <maximumf>, %13, %cst_7 [2] : vector<1x8x8xf32> to vector<1x8xf32>
    %15 = vector.shape_cast %14 : vector<1x8xf32> to vector<1x8x1xf32>
    %16 = vector.broadcast %15 : vector<1x8x1xf32> to vector<1x8x8xf32>
    %17 = arith.subf %13, %16 : vector<1x8x8xf32>
    %18 = math.exp %17 : vector<1x8x8xf32>
    %cst_8 = arith.constant dense<0.000000e+00> : vector<1x8xf32>
    %19 = vector.multi_reduction <add>, %18, %cst_8 [2] : vector<1x8x8xf32> to vector<1x8xf32>
    %20 = vector.shape_cast %19 : vector<1x8xf32> to vector<1x8x1xf32>
    %cst_9 = arith.constant dense<0.000000e+00> : vector<1x8x32xf32>
    %21 = tpu.matmul %18, %12, %cst_9 {dimension_numbers = #tpu.dot_dimension_numbers<[2], [1], [1], [2], [0, 0, 0, 1, 1, 2], [0], [0]>} : vector<1x8x8xf32>, vector<1x8x32xf32>, vector<1x8x32xf32> -> vector<1x8x32xf32>
    %22 = tpu.reciprocal %20 {approx = true} : vector<1x8x1xf32> -> vector<1x8x1xf32>
    %23 = vector.broadcast %22 : vector<1x8x1xf32> to vector<1x8x32xf32>
    %24 = arith.mulf %21, %23 : vector<1x8x32xf32>
    %c0_10 = arith.constant 0 : index
    %c0_11 = arith.constant 0 : index
    %c0_12 = arith.constant 0 : index
    %25 = vector.load %arg4[%c0_10, %c0_11, %c0_12] : memref<1x8x32xf32, #tpu.memory_space<vmem>>, vector<1x8x32xf32>
    tpu.vector_store %arg4[%c0_10, %c0_11, %c0_12], %24 {strides = array<i32>} : memref<1x8x32xf32, #tpu.memory_space<vmem>>, vector<1x8x32xf32>,
    return
  }
  func.func @transform_0(%arg0: i32) -> (i32, i32, i32) {
    %c0_i32 = arith.constant 0 : i32
    %c0_i32_0 = arith.constant 0 : i32
    %c0_i32_1 = arith.constant 0 : i32
    return %arg0, %c0_i32, %c0_i32_0 : i32, i32, i32
  }
  func.func @transform_1(%arg0: i32) -> (i32, i32) {
    %c0_i32 = arith.constant 0 : i32
    %c0_i32_0 = arith.constant 0 : i32
    %c0_i32_1 = arith.constant 0 : i32
    return %c0_i32, %c0_i32_0 : i32, i32
  }
  func.func @transform_2(%arg0: i32) -> (i32, i32) {
    %c0_i32 = arith.constant 0 : i32
    %c0_i32_0 = arith.constant 0 : i32
    %c0_i32_1 = arith.constant 0 : i32
    return %c0_i32, %c0_i32_0 : i32, i32
  }
  func.func @transform_3(%arg0: i32) -> (i32, i32, i32) {
    %c0_i32 = arith.constant 0 : i32
    %c0_i32_0 = arith.constant 0 : i32
    %c0_i32_1 = arith.constant 0 : i32
    return %arg0, %c0_i32, %c0_i32_0 : i32, i32, i32
  }
}

</mosaic_0001>

<llo_original>
// kernel: tpu_custom_call.1
$region0: #{tpu_custom_call.1}
  #allocation0 [shape = 'u32[]', space=smem, size = 0x4, offset = 0x4, fixed_abs, tag = 'smem constant byte address 0x4 - core index']
  #allocation1 [shape = 'u32[72,128]{1,0:T(1,128)}', space=vmem, size = 0x9000, scoped, tag = 'internal scratch']
  %s0 = inlined_call_operand.hbm [shape: f32[2,8,16], index: 0, kind: input, shape index: {}]
  %s1 = inlined_call_operand.hbm [shape: f32[16,384], index: 1, kind: input, shape index: {}]
  %s2 = inlined_call_operand.hbm [shape: f32[1,384], index: 2, kind: input, shape index: {}]
  %s3 = inlined_call_operand.hbm [shape: f32[2,8,32], index: 3, kind: output, shape index: {}]
  %s4 = sld [smem:[#allocation0]]
  $region57: #{tpu_custom_call.1} parent=0
    _
  %s6 = ssub.s32 1, %s4
  %s7 = scalar_select 0, %s6, %s4
  $region1: #{tpu_custom_call.1} parent=0
    #allocation2 [shape = 'u8[8192]{0}', space=vmem, size = 0x2000, scoped, tag = 'input window, operand 0']
    #allocation3 [shape = 's32[2]{0}', space=sflag, size = 0x8, scoped, tag = 'scoped memory for tpu_custom_call.1']
    #allocation4 [shape = 's32[2]{0}', space=sflag, size = 0x8, scoped, tag = 'scoped memory for tpu_custom_call.1']
    #allocation5 [shape = 'u8[24576]{0}', space=vmem, size = 0x6000, scoped, tag = 'input window, operand 1, single buffered']
    #allocation6 [shape = 's32[1]{0}', space=sflag, size = 0x4, scoped, tag = 'scoped memory for tpu_custom_call.1']
    #allocation7 [shape = 'u8[1536]{0}', space=vmem, size = 0x800, scoped, tag = 'input window, operand 2, single buffered']
    #allocation8 [shape = 'u8[8192]{0}', space=vmem, size = 0x2000, scoped, tag = 'output window, operand 0']
    %8 = vsyncpa [#allocation3], 0
    %s9 = scalar_lea.sflag [#allocation3], 1
    %10 = vsyncpa %s9, 0
    %11 = vsyncpa [#allocation6], 0
    %12 = vsyncpa [#allocation4], 0
    %s13 = scalar_lea.sflag [#allocation4], 1
    %14 = vsyncpa %s13, 0
    loop: start=0, step=1, limit=4
    $region2: #{tpu_custom_call.1} parent=1 // loop_pre_header
      _
    $region3: #{tpu_custom_call.1} parent=1 // loop_header
      %s16 = sphi 0, %s20
      %p17 = scmp.ge.s32.totalorder %s16, 4
      %s26 = sphi 0, %s28
      %s29 = sphi 0, %s26
      %s30 = sphi 0, %s29
      %s46 = sphi 0, %s30
      %s50 = sphi 0, %s50
      %s52 = sphi 0, %s50
      %s53 = sphi 0, %s52
      %s67 = sphi 0, %s53
      %s71 = sphi 0, %s71
      %s73 = sphi 0, %s71
      %s74 = sphi 0, %s73
      %s88 = sphi 0, %s74
      %s94 = sphi 0, %s96
      %s97 = sphi 0, %s94
      %s98 = sphi 0, %s97
      %s114 = sphi 0, %s98
    $region4: #{tpu_custom_call.1} parent=1 // loop_header_branch
      %19 = sbr.rel (%p17) target = $region8
    $region5: #{tpu_custom_call.1} parent=1 // loop_body
      %s21 = ssub.s32 %s16, 1
      %s22 = ssub.s32 %s16, 2
      %s23 = sadd.s32 %s16, 1
      %s24 = ssub.s32 %s16, %s23
      %p25 = scmp.eq.s32.totalorder %s24, 0
      %s27 = sadd.s32 %s26, 1
      %s28 = scalar_select %p25, %s26, %s27
      %p31 = pneg %p25
      %p32 = scmp.eq.s32.totalorder %s16, 1
      %p33 = por %p31, %p32
      %p34 = scmp.ne.s32.totalorder %s26, %s29
      %p35 = scmp.eq.s32.totalorder %s16, 0
      %p36 = por %p34, %p35
      %p37 = scmp.ne.s32.totalorder %s26, %s29
      %p38 = scmp.eq.s32.totalorder %s21, 1
      %p39 = por %p37, %p38
      %p40 = scmp.ne.s32.totalorder %s29, %s30
      %p41 = scmp.eq.s32.totalorder %s21, 0
      %p42 = por %p40, %p41
      %p43 = scmp.ne.s32.totalorder %s29, %s30
      %p44 = scmp.eq.s32.totalorder %s22, 1
      %p45 = por %p43, %p44
      %p47 = scmp.ne.s32.totalorder %s30, %s46
      %p48 = scmp.eq.s32.totalorder %s22, 0
      %p49 = por %p47, %p48
      %s51 = sadd.s32 %s50, 1
      %p54 = scmp.eq.s32.totalorder %s16, 1
      %p55 = scmp.ne.s32.totalorder %s50, %s52
      %p56 = scmp.eq.s32.totalorder %s16, 0
      %p57 = por %p55, %p56
      %p58 = scmp.ne.s32.totalorder %s50, %s52
      %p59 = scmp.eq.s32.totalorder %s21, 1
      %p60 = por %p58, %p59
      %p61 = scmp.ne.s32.totalorder %s52, %s53
      %p62 = scmp.eq.s32.totalorder %s21, 0
      %p63 = por %p61, %p62
      %p64 = scmp.ne.s32.totalorder %s52, %s53
      %p65 = scmp.eq.s32.totalorder %s22, 1
      %p66 = por %p64, %p65
      %p68 = scmp.ne.s32.totalorder %s53, %s67
      %p69 = scmp.eq.s32.totalorder %s22, 0
      %p70 = por %p68, %p69
      %s72 = sadd.s32 %s71, 1
      %p75 = scmp.eq.s32.totalorder %s16, 1
      %p76 = scmp.ne.s32.totalorder %s71, %s73
      %p77 = scmp.eq.s32.totalorder %s16, 0
      %p78 = por %p76, %p77
      %p79 = scmp.ne.s32.totalorder %s71, %s73
      %p80 = scmp.eq.s32.totalorder %s21, 1
      %p81 = por %p79, %p80
      %p82 = scmp.ne.s32.totalorder %s73, %s74
      %p83 = scmp.eq.s32.totalorder %s21, 0
      %p84 = por %p82, %p83
      %p85 = scmp.ne.s32.totalorder %s73, %s74
      %p86 = scmp.eq.s32.totalorder %s22, 1
      %p87 = por %p85, %p86
      %p89 = scmp.ne.s32.totalorder %s74, %s88
      %p90 = scmp.eq.s32.totalorder %s22, 0
      %p91 = por %p89, %p90
      %s92 = ssub.s32 %s16, %s23
      %p93 = scmp.eq.s32.totalorder %s92, 0
      %s95 = sadd.s32 %s94, 1
      %s96 = scalar_select %p93, %s94, %s95
      %p99 = pneg %p93
      %p100 = scmp.eq.s32.totalorder %s16, 1
      %p101 = por %p99, %p100
      %p102 = scmp.ne.s32.totalorder %s94, %s97
      %p103 = scmp.eq.s32.totalorder %s16, 0
      %p104 = por %p102, %p103
      %p105 = scmp.ne.s32.totalorder %s94, %s97
      %p106 = scmp.eq.s32.totalorder %s21, 1
      %p107 = por %p105, %p106
      %p108 = scmp.ne.s32.totalorder %s97, %s98
      %p109 = scmp.eq.s32.totalorder %s21, 0
      %p110 = por %p108, %p109
      %p111 = scmp.ne.s32.totalorder %s97, %s98
      %p112 = scmp.eq.s32.totalorder %s22, 1
      %p113 = por %p111, %p112
      %p115 = scmp.ne.s32.totalorder %s98, %s114
      %p116 = scmp.eq.s32.totalorder %s22, 0
      %p117 = por %p115, %p116
      %p118 = scmp.le.s32.totalorder 1, %s16
      %p119 = scmp.lt.s32.totalorder %s16, 3
      %p120 = pnand %p118, %p119
      %p121 = pneg %p120
      // Predicated region
      $region9: #{tpu_custom_call.1} parent=5 // pred_check
        _
      $region10: #{tpu_custom_call.1} parent=5 // pred_check_branch
        %123 = sbr.rel (%p120) target = $region12
      $region11: #{tpu_custom_call.1} parent=5 // pred_region
        %s124 = ssub.s32 %s16, 1
        // Predicated region
        $region13: #{tpu_custom_call.1} parent=11 // pred_check
          %p125 = pneg %p63
        $region14: #{tpu_custom_call.1} parent=11 // pred_check_branch
          %127 = sbr.rel (%p125) target = $region16
        $region15: #{tpu_custom_call.1} parent=11 // pred_region
          %129 = vsyncadd [#allocation6], 0
          %s130 = sshll.u32 %s1, 4
          %s131 = int_to_ptr.hbm [resolvable:$true] %s130
          %s132 = sshll.u32 [#allocation5], 4
          %s133 = int_to_ptr.vmem [resolvable:$true] %s132
          %138 = dma.hbm_to_vmem [thread:$0]  %s131, 768, %s133, [#allocation6], 384, 384, 24
        $region16: #{tpu_custom_call.1} parent=11 // pred_fallthru
          _
        // Predicated region
        $region17: #{tpu_custom_call.1} parent=11 // pred_check
          %p139 = pneg %p84
        $region18: #{tpu_custom_call.1} parent=11 // pred_check_branch
          %141 = sbr.rel (%p139) target = $region20
        $region19: #{tpu_custom_call.1} parent=11 // pred_region
          %143 = vsyncadd [#allocation6], 0
          %s145 = sshll.u32 %s2, 4
          %s146 = int_to_ptr.hbm [resolvable:$true] %s145
          %s147 = sshll.u32 [#allocation7], 4
          %s148 = int_to_ptr.vmem [resolvable:$true] %s147
          %150 = dma.hbm_to_vmem [thread:$0]  %s146, 48, %s148, [#allocation6]
        $region20: #{tpu_custom_call.1} parent=11 // pred_fallthru
          _
      $region12: #{tpu_custom_call.1} parent=5 // pred_fallthru
        _
      %p151 = scmp.lt.s32.totalorder %s16, 2
      // Predicated region
      $region21: #{tpu_custom_call.1} parent=5 // pred_check
        %p152 = pneg %p151
      $region22: #{tpu_custom_call.1} parent=5 // pred_check_branch
        %154 = sbr.rel (%p152) target = $region24
      $region23: #{tpu_custom_call.1} parent=5 // pred_region
        // Predicated region
        $region25: #{tpu_custom_call.1} parent=23 // pred_check
          %p155 = pneg %p36
        $region26: #{tpu_custom_call.1} parent=23 // pred_check_branch
          %157 = sbr.rel (%p155) target = $region28
        $region27: #{tpu_custom_call.1} parent=23 // pred_region
          %s158 = sand.u32 %s26, 1
          %s159 = scalar_lea.sflag [#allocation3], %s158
          %s160 = sand.u32 %s26, 1
          %s161 = smul.addr %s160, 8
          %s162 = scalar_lea.vmem [#allocation2], %s161
          %164 = vsyncadd %s159, 0
          %s165 = smul.addr %s16, 8
          %s166 = scalar_lea.hbm %s0, %s165
          %s168 = sshll.u32 %s166, 4
          %s169 = int_to_ptr.hbm [resolvable:$true] %s168
          %s170 = sshll.u32 %s162, 4
          %s171 = int_to_ptr.vmem [resolvable:$true] %s170
          %173 = dma.hbm_to_vmem [thread:$0]  %s169, 128, %s171, %s159
        $region28: #{tpu_custom_call.1} parent=23 // pred_fallthru
          _
      $region24: #{tpu_custom_call.1} parent=5 // pred_fallthru
        _
      %p174 = scmp.le.s32.totalorder 1, %s16
      %p175 = scmp.lt.s32.totalorder %s16, 3
      %p176 = pnand %p174, %p175
      %p177 = pneg %p176
      // Predicated region
      $region29: #{tpu_custom_call.1} parent=5 // pred_check
        _
      $region30: #{tpu_custom_call.1} parent=5 // pred_check_branch
        %179 = sbr.rel (%p176) target = $region32
      $region31: #{tpu_custom_call.1} parent=5 // pred_region
        %s180 = ssub.s32 %s16, 1
        %s181 = sand.u32 %s29, 1
        %s182 = scalar_lea.sflag [#allocation3], %s181
        %s183 = sand.u32 %s29, 1
        %s184 = smul.addr %s183, 8
        %s185 = scalar_lea.vmem [#allocation2], %s184
        // Predicated region
        $region33: #{tpu_custom_call.1} parent=31 // pred_check
          %p186 = pneg %p42
        $region34: #{tpu_custom_call.1} parent=31 // pred_check_branch
          %188 = sbr.rel (%p186) target = $region36
        $region35: #{tpu_custom_call.1} parent=31 // pred_region
          %190 = dma.done %s182, 128
        $region36: #{tpu_custom_call.1} parent=31 // pred_fallthru
          _
        // Predicated region
        $region37: #{tpu_custom_call.1} parent=31 // pred_check
          %p191 = pneg %p63
        $region38: #{tpu_custom_call.1} parent=31 // pred_check_branch
          %193 = sbr.rel (%p191) target = $region40
        $region39: #{tpu_custom_call.1} parent=31 // pred_region
          %195 = dma.done [#allocation6], 768
        $region40: #{tpu_custom_call.1} parent=31 // pred_fallthru
          _
        // Predicated region
        $region41: #{tpu_custom_call.1} parent=31 // pred_check
          %p196 = pneg %p84
        $region42: #{tpu_custom_call.1} parent=31 // pred_check_branch
          %198 = sbr.rel (%p196) target = $region44
        $region43: #{tpu_custom_call.1} parent=31 // pred_region
          %200 = dma.done [#allocation6], 48
        $region44: #{tpu_custom_call.1} parent=31 // pred_fallthru
          _
        %s201 = sand.u32 %s29, 1
        %s202 = scalar_lea.sflag [#allocation3], %s201
        %s203 = sand.u32 %s29, 1
        %s204 = smul.addr %s203, 8
        %s205 = scalar_lea.vmem [#allocation2], %s204
        %p206 = pneg %p42
        %p207 = pneg %p39
        %p208 = pneg %p63
        %p209 = pneg %p60
        %p210 = pneg %p84
        %p211 = pneg %p81
        %p212 = pneg %p110
        %p213 = pneg %p107
        %s214 = sand.u32 %s97, 1
        %s215 = scalar_lea.sflag [#allocation4], %s214
        %s216 = sand.u32 %s97, 1
        %s217 = smul.addr %s216, 8
        %s218 = scalar_lea.vmem [#allocation8], %s217
        %v219 = vld [vmem:[%s185] sm:$0xff]
        %v220 = vld [vmem:[#allocation5] sm:$0xff]
        %v221 = vld [vmem:[#allocation5 + $0x8] sm:$0xff]
        %v222 = vld [vmem:[#allocation5 + $0x10] sm:$0xff]
        %v223 = vld [vmem:[#allocation5 + $0x18] sm:$0xff]
        %v224 = vld [vmem:[#allocation5 + $0x20] sm:$0xff]
        %v225 = vld [vmem:[#allocation5 + $0x28] sm:$0xff]
        %v226 = vld [vmem:[#allocation7] sm:$0x7]
        %v228 = vperm.slane %v226, 0
        %v229 = vperm.slane %v226, 1
        %v230 = vperm.slane %v226, 2
        %vm234 = vcmask 130048
        %v236 = vsel %vm234, %v219, 0
        %238 = vmatpush.msra.mxu0 0.0
        %239 = vmatpush.msra.mxu0 0.0
        %240 = vmatpush.msra.mxu0 0.0
        %241 = vmatpush.msra.mxu0 0.0
        %242 = vmatpush.msra.mxu0 0.0
        %243 = vmatpush.msra.mxu0 0.0
        %244 = vmatpush.msra.mxu0 0.0
        %245 = vmatpush.msra.mxu0 0.0
        %246 = vmatpush.msra.mxu0 0.0
        %247 = vmatpush.msra.mxu0 0.0
        %248 = vmatpush.msra.mxu0 0.0
        %249 = vmatpush.msra.mxu0 0.0
        %250 = vmatpush.msra.mxu0 0.0
        %251 = vmatpush.msra.mxu0 0.0
        %252 = vmatpush.msra.mxu0 %v223
        %253 = vmatpush.msra.mxu0 %v220
        %254 = vmatmul.f32.gmra.mxu0 %v236
        %v255 = vpop.f32.mrf.mxu0
        %v256 = vadd.f32 %v228, %v255
        %257 = vdwg.mxu0
        %258 = vmatpush.msra.mxu0 0.0
        %259 = vmatpush.msra.mxu0 0.0
        %260 = vmatpush.msra.mxu0 0.0
        %261 = vmatpush.msra.mxu0 0.0
        %262 = vmatpush.msra.mxu0 0.0
        %263 = vmatpush.msra.mxu0 0.0
        %264 = vmatpush.msra.mxu0 0.0
        %265 = vmatpush.msra.mxu0 0.0
        %266 = vmatpush.msra.mxu0 0.0
        %267 = vmatpush.msra.mxu0 0.0
        %268 = vmatpush.msra.mxu0 0.0
        %269 = vmatpush.msra.mxu0 0.0
        %270 = vmatpush.msra.mxu0 0.0
        %271 = vmatpush.msra.mxu0 0.0
        %272 = vmatpush.msra.mxu0 %v224
        %273 = vmatpush.msra.mxu0 %v221
        %274 = vmatmul.f32.gmra.mxu0 %v236
        %v275 = vpop.f32.mrf.mxu0
        %v276 = vadd.f32 %v229, %v275
        %277 = vdwg.mxu0
        %278 = vmatpush.msra.mxu0 0.0
        %279 = vmatpush.msra.mxu0 0.0
        %280 = vmatpush.msra.mxu0 0.0
        %281 = vmatpush.msra.mxu0 0.0
        %282 = vmatpush.msra.mxu0 0.0
        %283 = vmatpush.msra.mxu0 0.0
        %284 = vmatpush.msra.mxu0 0.0
        %285 = vmatpush.msra.mxu0 0.0
        %286 = vmatpush.msra.mxu0 0.0
        %287 = vmatpush.msra.mxu0 0.0
        %288 = vmatpush.msra.mxu0 0.0
        %289 = vmatpush.msra.mxu0 0.0
        %290 = vmatpush.msra.mxu0 0.0
        %291 = vmatpush.msra.mxu0 0.0
        %292 = vmatpush.msra.mxu0 %v225
        %293 = vmatpush.msra.mxu0 %v222
        %294 = vmatmul.f32.gmra.mxu0 %v236
        %v295 = vpop.f32.mrf.mxu0
        %v296 = vadd.f32 %v230, %v295
        %297 = vdwg.mxu0
        %298 = vmatpush.xpose.msra.mxu0 0.0
        %299 = vmatpush.xpose.msra.mxu0 0.0
        %300 = vmatpush.xpose.msra.mxu0 0.0
        %301 = vmatpush.xpose.msra.mxu0 0.0
        %302 = vmatpush.xpose.msra.mxu0 0.0
        %303 = vmatpush.xpose.msra.mxu0 0.0
        %304 = vmatpush.xpose.msra.mxu0 0.0
        %305 = vmatpush.xpose.msra.mxu0 0.0
        %306 = vmatpush.xpose.msra.mxu0 0.0
        %307 = vmatpush.xpose.msra.mxu0 0.0
        %308 = vmatpush.xpose.msra.mxu0 0.0
        %309 = vmatpush.xpose.msra.mxu0 0.0
        %310 = vmatpush.xpose.msra.mxu0 0.0
        %311 = vmatpush.xpose.msra.mxu0 0.0
        %312 = vmatpush.xpose.msra.mxu0 0.0
        %313 = vmatpush.xpose.msra.mxu0 %v276
        %314 = vmatmul.f32.gmra.mxu0 %v256
        %v315 = vpop.f32.mrf.mxu0
        %v316 = vadd.f32 0.0, %v315
        %317 = vdwg.mxu0
        %vm318 = vcmask 64512
        %v319 = vsel %vm318, %v316, -inf
        %320 = vmax.xlane.f32.xlu0 %v319
        %v321 = vpop.xlane.xlu0 %320
        %v322 = vsub.f32 %v316, %v321
        %v323 = vmul.f32 %v322, 1.442695
        %v324 = vpow.pop %v323
        %v325 = vsel %vm318, %v324, 0.0
        %326 = vadd.xlane.f32.xlu0 %v325
        %v327 = vpop.xlane.xlu0 %326
        %v329 = vsel %vm318, %v324, 0
        %331 = vmatpush.msra.mxu0 0.0
        %332 = vmatpush.msra.mxu0 0.0
        %333 = vmatpush.msra.mxu0 0.0
        %334 = vmatpush.msra.mxu0 0.0
        %335 = vmatpush.msra.mxu0 0.0
        %336 = vmatpush.msra.mxu0 0.0
        %337 = vmatpush.msra.mxu0 0.0
        %338 = vmatpush.msra.mxu0 0.0
        %339 = vmatpush.msra.mxu0 0.0
        %340 = vmatpush.msra.mxu0 0.0
        %341 = vmatpush.msra.mxu0 0.0
        %342 = vmatpush.msra.mxu0 0.0
        %343 = vmatpush.msra.mxu0 0.0
        %344 = vmatpush.msra.mxu0 0.0
        %345 = vmatpush.msra.mxu0 0.0
        %346 = vmatpush.msra.mxu0 %v296
        %347 = vmatmul.f32.gmra.mxu0 %v329
        %v348 = vpop.f32.mrf.mxu0
        %v349 = vadd.f32 0.0, %v348
        %350 = vdwg.mxu0
        %v351 = vrcp.pop %v327
        %v352 = vmul.f32 %v349, %v351
        %vm353 = vcmask 261120
        %354 = vst.msk [vmem:[%s218] sm:$0xff] %vm353, %v352
        %s355 = sand.u32 %s97, 1
        %s356 = scalar_lea.sflag [#allocation4], %s355
        %s357 = sand.u32 %s97, 1
        %s358 = smul.addr %s357, 8
        %s359 = scalar_lea.vmem [#allocation8], %s358
        // Predicated region
        $region45: #{tpu_custom_call.1} parent=31 // pred_check
          %p360 = pneg %p107
        $region46: #{tpu_custom_call.1} parent=31 // pred_check_branch
          %362 = sbr.rel (%p360) target = $region48
        $region47: #{tpu_custom_call.1} parent=31 // pred_region
          %364 = vsyncadd %s356, 0
          %s365 = smul.addr %s21, 8
          %s366 = scalar_lea.hbm %s3, %s365
          %s368 = sshll.u32 %s359, 4
          %s369 = int_to_ptr.vmem [resolvable:$true] %s368
          %s370 = sshll.u32 %s366, 4
          %s371 = int_to_ptr.hbm [resolvable:$true] %s370
          %373 = dma.vmem_to_hbm [thread:$0]  %s369, 128, %s371, %s356
        $region48: #{tpu_custom_call.1} parent=31 // pred_fallthru
          _
      $region32: #{tpu_custom_call.1} parent=5 // pred_fallthru
        _
      %p374 = scmp.le.s32.totalorder 2, %s16
      // Predicated region
      $region49: #{tpu_custom_call.1} parent=5 // pred_check
        %p375 = pneg %p374
      $region50: #{tpu_custom_call.1} parent=5 // pred_check_branch
        %377 = sbr.rel (%p375) target = $region52
      $region51: #{tpu_custom_call.1} parent=5 // pred_region
        %s378 = ssub.s32 %s16, 2
        // Predicated region
        $region53: #{tpu_custom_call.1} parent=51 // pred_check
          %p379 = pneg %p113
        $region54: #{tpu_custom_call.1} parent=51 // pred_check_branch
          %381 = sbr.rel (%p379) target = $region56
        $region55: #{tpu_custom_call.1} parent=51 // pred_region
          %s382 = sand.u32 %s98, 1
          %s383 = scalar_lea.sflag [#allocation4], %s382
          %s384 = sand.u32 %s98, 1
          %s385 = smul.addr %s384, 8
          %s386 = scalar_lea.vmem [#allocation8], %s385
          %388 = dma.done %s383, 128
        $region56: #{tpu_custom_call.1} parent=51 // pred_fallthru
          _
      $region52: #{tpu_custom_call.1} parent=5 // pred_fallthru
        _
    $region6: #{tpu_custom_call.1} parent=1 // loop_footer
      %s20 = sadd.s32 1, %s16
    $region7: #{tpu_custom_call.1} parent=1 // loop_footer_branch
      %15 = sbr.rel target = $region3
    $region8: #{tpu_custom_call.1} parent=1 // loop_exit
      _
    %389 = vsyncpa [#allocation3], 1
    %s390 = scalar_lea.sflag [#allocation3], 1
    %391 = vsyncpa %s390, 1
    %392 = vsyncpa [#allocation6], 1
    %393 = vsyncpa [#allocation4], 1
    %s394 = scalar_lea.sflag [#allocation4], 1
    %395 = vsyncpa %s394, 1

</llo_original>
